<compile_context>
chip_gen: v7x
topology: tpu7x:2x2x1
jax: 0.10.0
libtpu: 0.0.40
codegen_flags: <defaults>
</compile_context>

<pallas_src>
import functools

import jax
import jax.numpy as jnp
from jax.experimental import pallas as pl
from jax.experimental.pallas import tpu as pltpu


def _unet_down_kernel(x_ref, w_ref, o_ref, *, WP, OH, OW, normalize, eps):
    # x_ref: (R, 4C) bf16   space-to-depth input, flattened padded HPxWP grid
    # w_ref: (4, 4C, C_out) bf16   regrouped k=2 conv weight
    # o_ref: (HP*WP, C_out) f32
    hpwp, c_out = o_ref.shape

    # k=2, s=1 conv: 4 shifted sublane slices, each an MXU matmul, f32 acc.
    acc = jnp.zeros((hpwp, c_out), jnp.float32)
    for p, d in enumerate((0, 1, WP, WP + 1)):       # (ph, pw) in {0,1}^2
        xs = x_ref[pl.ds(d, hpwp), :]                # (HP*WP, 4C) bf16
        acc = acc + jnp.dot(xs, w_ref[p],
                            preferred_element_type=jnp.float32)

    # Rows of the padded HPxWP grid that correspond to real OHxOW outputs.
    row = jax.lax.broadcasted_iota(jnp.int32, (hpwp, 1), 0)
    valid = ((row % WP) < OW) & (row < OH * WP)

    z = acc
    if normalize:
        # Single-pass InstanceNorm2d (affine=False, biased variance), f32.
        inv_n = 1.0 / float(OH * OW)
        ym = jnp.where(valid, acc, 0.0)
        s1 = jnp.sum(ym, axis=0, keepdims=True)          # (1, C_out)
        s2 = jnp.sum(ym * ym, axis=0, keepdims=True)     # (1, C_out)
        mean = s1 * inv_n
        var = jnp.maximum(s2 * inv_n - mean * mean, 0.0)
        z = (acc - mean) * jax.lax.rsqrt(var + eps)

    # LeakyReLU(0.2).  Invalid rows hold garbage; the wrapper slices them off.
    z = jnp.where(z >= 0, z, 0.2 * z)
    o_ref[...] = z


def unet_down(x, weight, *, normalize=True, dropout=0.0, eps=1e-5):
    """x: (N, C, H, W) f32; weight: (C_out, C, 4, 4) f32 (Conv2d, bias=False)."""
    # dropout=0.0 -> no Dropout layer (the PyTorch default __init__).
    # TODO(synk): train-time Dropout (dropout > 0) is not implemented.
    assert dropout == 0.0
    N, C, H, W = x.shape
    C_out = weight.shape[0]
    assert weight.shape == (C_out, C, 4, 4)
    assert H % 2 == 0 and W % 2 == 0

    OH, OW = H // 2, W // 2
    HP, WP = OH + 1, OW + 1        # space-to-depth grid of the padded input
    HPWP = HP * WP
    R = HPWP + WP + 1              # + zero tail rows so all 4 shifts stay in-bounds
    C4 = 4 * C

    # 2x2 space-to-depth of the zero-padded input, NHWC-flat, bf16.
    xb = x.astype(jnp.bfloat16)
    xp = jnp.pad(xb, ((0, 0), (0, 0), (1, 1), (1, 1)))       # (N, C, H+2, W+2)
    xp = xp.reshape(N, C, HP, 2, WP, 2)                      # (n, c, hp, dh, wp, dw)
    xp = jnp.transpose(xp, (0, 2, 4, 3, 5, 1))               # (n, hp, wp, dh, dw, c)
    xflat = xp.reshape(N, HPWP, C4)
    xflat = jnp.pad(xflat, ((0, 0), (0, R - HPWP), (0, 0)))  # zero tail rows

    # Regroup the 4x4 conv weight into the equivalent k=2 weight on 4C chans:
    #   w2[2*ph+pw, dh*2C+dw*C+c, o] = W[o, c, 2*ph+dh, 2*pw+dw]
    wb = weight.astype(jnp.bfloat16)
    wb = wb.reshape(C_out, C, 2, 2, 2, 2)                    # (o, c, ph, dh, pw, dw)
    wb = jnp.transpose(wb, (2, 4, 3, 5, 1, 0))               # (ph, pw, dh, dw, c, o)
    w2 = wb.reshape(4, C4, C_out)

    kernel = functools.partial(_unet_down_kernel, WP=WP, OH=OH, OW=OW,
                               normalize=normalize, eps=eps)

    out_flat = pl.pallas_call(
        kernel,
        out_shape=jax.ShapeDtypeStruct((N, HPWP, C_out), jnp.float32),
        grid=(N,),
        in_specs=[
            pl.BlockSpec((None, R, C4), lambda n: (n, 0, 0)),
            pl.BlockSpec((4, C4, C_out), lambda n: (0, 0, 0)),
        ],
        out_specs=pl.BlockSpec((None, HPWP, C_out), lambda n: (n, 0, 0)),
        compiler_params=pltpu.CompilerParams(
            dimension_semantics=("parallel",)),
    )(xflat, w2)

    # (N, HP*WP, C_out) -> (N, C_out, OH, OW): drop padded row/col, back to NCHW.
    out = out_flat.reshape(N, HP, WP, C_out)[:, :OH, :OW, :]
    return jnp.transpose(out, (0, 3, 1, 2))


def _reference(x, weight, eps=1e-5):
    """Pure-JAX f32 reference: conv2d(k4,s2,p1,no bias) -> InstanceNorm -> LeakyReLU(0.2)."""
    y = jax.lax.conv_general_dilated(
        x, weight, window_strides=(2, 2), padding=((1, 1), (1, 1)),
        dimension_numbers=("NCHW", "OIHW", "NCHW"),
        preferred_element_type=jnp.float32,
    )
    mean = jnp.mean(y, axis=(2, 3), keepdims=True)
    var = jnp.mean((y - mean) ** 2, axis=(2, 3), keepdims=True)
    z = (y - mean) * jax.lax.rsqrt(var + eps)
    return jnp.where(z >= 0, z, 0.2 * z)


if __name__ == "__main__":
    key = jax.random.PRNGKey(0)
    kx, kw = jax.random.split(key)

    N, C_in, C_out, H, W = 2, 4, 8, 16, 16
    x = jax.random.normal(kx, (N, C_in, H, W), dtype=jnp.float32)
    fan_in = C_in * 4 * 4
    weight = jax.random.normal(kw, (C_out, C_in, 4, 4), dtype=jnp.float32) * (
        1.0 / jnp.sqrt(fan_in)
    )

    out = jax.block_until_ready(jax.jit(unet_down)(x, weight))
    assert out.shape == (N, C_out, H // 2, W // 2), out.shape

    ref = jax.block_until_ready(_reference(x, weight))
    # bf16 MXU operands -> ~1e-2-level deviation from the f32 reference.
    assert jnp.allclose(out, ref, atol=3e-2, rtol=3e-2), float(
        jnp.max(jnp.abs(out - ref))
    )

    print("KERNEL_OK")
</pallas_src>

<mosaic_0001>
module attributes {stable_mosaic.version = 11 : i64} {
  func.func @_unet_down_kernel(%arg0: i32, %arg1: memref<1x91x16xbf16, #tpu.memory_space<vmem>>, %arg2: memref<4x16x8xbf16, #tpu.memory_space<vmem>>, %arg3: memref<1x81x8xf32, #tpu.memory_space<vmem>>) attributes {dimension_semantics = [#tpu.dimension_semantics<parallel>], iteration_bounds = array<i64: 2>, scalar_prefetch = 0 : i64, scratch_operands = 0 : i64, tpu.core_type = #tpu.core_type<tc>, window_params = [{transform_indices = @transform_0, window_bounds = array<i64: 1, 91, 16>}, {pipeline_mode = #tpu.pipeline_mode<synchronous>, transform_indices = @transform_1, window_bounds = array<i64: 4, 16, 8>}, {transform_indices = @transform_2, window_bounds = array<i64: 1, 81, 8>}]} {
    %cst = arith.constant 0.000000e+00 : f32
    %0 = vector.broadcast %cst : f32 to vector<81x8xf32>
    %c0 = arith.constant 0 : index
    %c0_0 = arith.constant 0 : index
    %c0_1 = arith.constant 0 : index
    %1 = vector.load %arg1[%c0, %c0_0, %c0_1] : memref<1x91x16xbf16, #tpu.memory_space<vmem>>, vector<1x81x16xbf16>
    %2 = vector.shape_cast %1 : vector<1x81x16xbf16> to vector<81x16xbf16>
    %c0_2 = arith.constant 0 : index
    %c0_3 = arith.constant 0 : index
    %c0_4 = arith.constant 0 : index
    %3 = vector.load %arg2[%c0_2, %c0_3, %c0_4] : memref<4x16x8xbf16, #tpu.memory_space<vmem>>, vector<1x16x8xbf16>
    %4 = vector.shape_cast %3 : vector<1x16x8xbf16> to vector<16x8xbf16>
    %cst_5 = arith.constant dense<0.000000e+00> : vector<81x8xf32>
    %5 = tpu.matmul %2, %4, %cst_5 {dimension_numbers = #tpu.dot_dimension_numbers<[1], [0], [0], [1], [0, 0, 1, 1], [], []>} : vector<81x16xbf16>, vector<16x8xbf16>, vector<81x8xf32> -> vector<81x8xf32>
    %6 = arith.addf %0, %5 : vector<81x8xf32>
    %c0_6 = arith.constant 0 : index
    %c1 = arith.constant 1 : index
    %c0_7 = arith.constant 0 : index
    %7 = vector.load %arg1[%c0_6, %c1, %c0_7] : memref<1x91x16xbf16, #tpu.memory_space<vmem>>, vector<1x81x16xbf16>
    %8 = vector.shape_cast %7 : vector<1x81x16xbf16> to vector<81x16xbf16>
    %c1_8 = arith.constant 1 : index
    %c0_9 = arith.constant 0 : index
    %c0_10 = arith.constant 0 : index
    %9 = vector.load %arg2[%c1_8, %c0_9, %c0_10] : memref<4x16x8xbf16, #tpu.memory_space<vmem>>, vector<1x16x8xbf16>
    %10 = vector.shape_cast %9 : vector<1x16x8xbf16> to vector<16x8xbf16>
    %cst_11 = arith.constant dense<0.000000e+00> : vector<81x8xf32>
    %11 = tpu.matmul %8, %10, %cst_11 {dimension_numbers = #tpu.dot_dimension_numbers<[1], [0], [0], [1], [0, 0, 1, 1], [], []>} : vector<81x16xbf16>, vector<16x8xbf16>, vector<81x8xf32> -> vector<81x8xf32>
    %12 = arith.addf %6, %11 : vector<81x8xf32>
    %c0_12 = arith.constant 0 : index
    %c9 = arith.constant 9 : index
    %c0_13 = arith.constant 0 : index
    %13 = vector.load %arg1[%c0_12, %c9, %c0_13] : memref<1x91x16xbf16, #tpu.memory_space<vmem>>, vector<1x81x16xbf16>
    %14 = vector.shape_cast %13 : vector<1x81x16xbf16> to vector<81x16xbf16>
    %c2 = arith.constant 2 : index
    %c0_14 = arith.constant 0 : index
    %c0_15 = arith.constant 0 : index
    %15 = vector.load %arg2[%c2, %c0_14, %c0_15] : memref<4x16x8xbf16, #tpu.memory_space<vmem>>, vector<1x16x8xbf16>
    %16 = vector.shape_cast %15 : vector<1x16x8xbf16> to vector<16x8xbf16>
    %cst_16 = arith.constant dense<0.000000e+00> : vector<81x8xf32>
    %17 = tpu.matmul %14, %16, %cst_16 {dimension_numbers = #tpu.dot_dimension_numbers<[1], [0], [0], [1], [0, 0, 1, 1], [], []>} : vector<81x16xbf16>, vector<16x8xbf16>, vector<81x8xf32> -> vector<81x8xf32>
    %18 = arith.addf %12, %17 : vector<81x8xf32>
    %c0_17 = arith.constant 0 : index
    %c10 = arith.constant 10 : index
    %c0_18 = arith.constant 0 : index
    %19 = vector.load %arg1[%c0_17, %c10, %c0_18] : memref<1x91x16xbf16, #tpu.memory_space<vmem>>, vector<1x81x16xbf16>
    %20 = vector.shape_cast %19 : vector<1x81x16xbf16> to vector<81x16xbf16>
    %c3 = arith.constant 3 : index
    %c0_19 = arith.constant 0 : index
    %c0_20 = arith.constant 0 : index
    %21 = vector.load %arg2[%c3, %c0_19, %c0_20] : memref<4x16x8xbf16, #tpu.memory_space<vmem>>, vector<1x16x8xbf16>
    %22 = vector.shape_cast %21 : vector<1x16x8xbf16> to vector<16x8xbf16>
    %cst_21 = arith.constant dense<0.000000e+00> : vector<81x8xf32>
    %23 = tpu.matmul %20, %22, %cst_21 {dimension_numbers = #tpu.dot_dimension_numbers<[1], [0], [0], [1], [0, 0, 1, 1], [], []>} : vector<81x16xbf16>, vector<16x8xbf16>, vector<81x8xf32> -> vector<81x8xf32>
    %24 = arith.addf %18, %23 : vector<81x8xf32>
    %25 = tpu.iota {dimensions = array<i32: 0>} : vector<81x1xi32>
    %c9_i32 = arith.constant 9 : i32
    %c0_i32 = arith.constant 0 : i32
    %26 = arith.cmpi eq, %c9_i32, %c0_i32 : i32
    %c1_i32 = arith.constant 1 : i32
    %27 = arith.select %26, %c1_i32, %c9_i32 : i32
    %28 = vector.broadcast %27 : i32 to vector<81x1xi32>
    %29 = arith.remsi %25, %28 : vector<81x1xi32>
    %c0_i32_22 = arith.constant 0 : i32
    %30 = vector.broadcast %c0_i32_22 : i32 to vector<81x1xi32>
    %31 = arith.cmpi ne, %29, %30 : vector<81x1xi32>
    %c0_i32_23 = arith.constant 0 : i32
    %32 = vector.broadcast %c0_i32_23 : i32 to vector<81x1xi32>
    %33 = arith.cmpi slt, %29, %32 : vector<81x1xi32>
    %c0_i32_24 = arith.constant 0 : i32
    %34 = arith.cmpi slt, %27, %c0_i32_24 : i32
    %35 = vector.broadcast %34 : i1 to vector<81x1xi1>
    %36 = vector.broadcast %35 : vector<81x1xi1> to vector<81x1xi1>
    %37 = arith.xori %33, %36 : vector<81x1xi1>
    %38 = arith.andi %37, %31 : vector<81x1xi1>
    %39 = vector.broadcast %27 : i32 to vector<81x1xi32>
    %40 = arith.addi %29, %39 : vector<81x1xi32>
    %41 = arith.select %38, %40, %29 : vector<81x1xi1>, vector<81x1xi32>
    %c8_i32 = arith.constant 8 : i32
    %42 = vector.broadcast %c8_i32 : i32 to vector<81x1xi32>
    %43 = arith.cmpi slt, %41, %42 : vector<81x1xi32>
    %c72_i32 = arith.constant 72 : i32
    %44 = vector.broadcast %c72_i32 : i32 to vector<81x1xi32>
    %45 = arith.cmpi slt, %25, %44 : vector<81x1xi32>
    %46 = arith.andi %43, %45 : vector<81x1xi1>
    %cst_25 = arith.constant 0.000000e+00 : f32
    %47 = vector.shape_cast %46 : vector<81x1xi1> to vector<81x1xi1>
    %48 = vector.broadcast %47 : vector<81x1xi1> to vector<81x8xi1>
    %49 = vector.broadcast %cst_25 : f32 to vector<81x8xf32>
    %50 = arith.select %48, %24, %49 : vector<81x8xi1>, vector<81x8xf32>
    %cst_26 = arith.constant dense<0.000000e+00> : vector<8xf32>
    %51 = vector.multi_reduction <add>, %50, %cst_26 [0] : vector<81x8xf32> to vector<8xf32>
    %52 = vector.shape_cast %51 : vector<8xf32> to vector<1x8xf32>
    %53 = arith.mulf %50, %50 : vector<81x8xf32>
    %cst_27 = arith.constant dense<0.000000e+00> : vector<8xf32>
    %54 = vector.multi_reduction <add>, %53, %cst_27 [0] : vector<81x8xf32> to vector<8xf32>
    %55 = vector.shape_cast %54 : vector<8xf32> to vector<1x8xf32>
    %cst_28 = arith.constant 1.562500e-02 : f32
    %56 = vector.broadcast %cst_28 : f32 to vector<1x8xf32>
    %57 = arith.mulf %52, %56 : vector<1x8xf32>
    %cst_29 = arith.constant 1.562500e-02 : f32
    %58 = vector.broadcast %cst_29 : f32 to vector<1x8xf32>
    %59 = arith.mulf %55, %58 : vector<1x8xf32>
    %60 = arith.mulf %57, %57 : vector<1x8xf32>
    %61 = arith.subf %59, %60 : vector<1x8xf32>
    %cst_30 = arith.constant 0.000000e+00 : f32
    %62 = vector.broadcast %cst_30 : f32 to vector<1x8xf32>
    %63 = arith.maximumf %61, %62 : vector<1x8xf32>
    %64 = vector.broadcast %57 : vector<1x8xf32> to vector<81x8xf32>
    %65 = arith.subf %24, %64 : vector<81x8xf32>
    %cst_31 = arith.constant 9.99999974E-6 : f32
    %66 = vector.broadcast %cst_31 : f32 to vector<1x8xf32>
    %67 = arith.addf %63, %66 : vector<1x8xf32>
    %68 = math.rsqrt %67 : vector<1x8xf32>
    %69 = vector.broadcast %68 : vector<1x8xf32> to vector<81x8xf32>
    %70 = arith.mulf %65, %69 : vector<81x8xf32>
    %cst_32 = arith.constant 0.000000e+00 : f32
    %71 = vector.broadcast %cst_32 : f32 to vector<81x8xf32>
    %72 = arith.cmpf oge, %70, %71 : vector<81x8xf32>
    %cst_33 = arith.constant 2.000000e-01 : f32
    %73 = vector.broadcast %cst_33 : f32 to vector<81x8xf32>
    %74 = arith.mulf %73, %70 : vector<81x8xf32>
    %75 = arith.select %72, %70, %74 : vector<81x8xi1>, vector<81x8xf32>
    %c0_34 = arith.constant 0 : index
    %c0_35 = arith.constant 0 : index
    %c0_36 = arith.constant 0 : index
    %76 = vector.load %arg3[%c0_34, %c0_35, %c0_36] : memref<1x81x8xf32, #tpu.memory_space<vmem>>, vector<1x81x8xf32>
    %77 = vector.shape_cast %76 : vector<1x81x8xf32> to vector<81x8xf32>
    %78 = vector.shape_cast %75 : vector<81x8xf32> to vector<1x81x8xf32>
    tpu.vector_store %arg3[%c0_34, %c0_35, %c0_36], %78 {strides = array<i32>} : memref<1x81x8xf32, #tpu.memory_space<vmem>>, vector<1x81x8xf32>,
    return
  }
  func.func @transform_0(%arg0: i32) -> (i32, i32, i32) {
    %c0_i32 = arith.constant 0 : i32
    %c0_i32_0 = arith.constant 0 : i32
    %c0_i32_1 = arith.constant 0 : i32
    return %arg0, %c0_i32, %c0_i32_0 : i32, i32, i32
  }
  func.func @transform_1(%arg0: i32) -> (i32, i32, i32) {
    %c0_i32 = arith.constant 0 : i32
    %c0_i32_0 = arith.constant 0 : i32
    %c0_i32_1 = arith.constant 0 : i32
    %c0_i32_2 = arith.constant 0 : i32
    return %c0_i32, %c0_i32_0, %c0_i32_1 : i32, i32, i32
  }
  func.func @transform_2(%arg0: i32) -> (i32, i32, i32) {
    %c0_i32 = arith.constant 0 : i32
    %c0_i32_0 = arith.constant 0 : i32
    %c0_i32_1 = arith.constant 0 : i32
    return %arg0, %c0_i32, %c0_i32_0 : i32, i32, i32
  }
}

</mosaic_0001>

<llo_original>
// kernel: unet_down.1
$region0: #{unet_down.1}
  #allocation0 [shape = 'u32[]', space=smem, size = 0x4, offset = 0x4, fixed_abs, tag = 'smem constant byte address 0x4 - core index']
  #allocation1 [shape = 'u32[144,128]{1,0:T(1,128)}', space=vmem, size = 0x12000, scoped, tag = 'internal scratch']
  %s0 = inlined_call_operand.vmem [shape: bf16[2,91,16], index: 0, kind: input, shape index: {}]
  %s1 = inlined_call_operand.vmem [shape: bf16[4,16,8], index: 1, kind: input, shape index: {}]
  %s2 = inlined_call_operand.vmem [shape: f32[2,81,8], index: 2, kind: output, shape index: {}]
  %s3 = sld [smem:[#allocation0]]
  $region41: #{unet_down.1} parent=0
    _
  %s5 = ssub.s32 1, %s3
  %s6 = scalar_select 0, %s5, %s3
  loop: start=0, step=1, limit=4
  $region2: #{unet_down.1} parent=0 // loop_pre_header
    _
  $region3: #{unet_down.1} parent=0 // loop_header
    %s8 = sphi 0, %s12
    %p9 = scmp.ge.s32.totalorder %s8, 4
    %s18 = sphi 0, %s20
    %s21 = sphi 0, %s18
    %s22 = sphi 0, %s21
    %s38 = sphi 0, %s22
    %s42 = sphi 0, %s42
    %s44 = sphi 0, %s42
    %s45 = sphi 0, %s44
    %s59 = sphi 0, %s45
    %s65 = sphi 0, %s67
    %s68 = sphi 0, %s65
    %s69 = sphi 0, %s68
    %s85 = sphi 0, %s69
  $region4: #{unet_down.1} parent=0 // loop_header_branch
    %11 = sbr.rel (%p9) target = $region8
  $region5: #{unet_down.1} parent=0 // loop_body
    %s13 = ssub.s32 %s8, 1
    %s14 = ssub.s32 %s8, 2
    %s15 = sadd.s32 %s8, 1
    %s16 = ssub.s32 %s8, %s15
    %p17 = scmp.eq.s32.totalorder %s16, 0
    %s19 = sadd.s32 %s18, 1
    %s20 = scalar_select %p17, %s18, %s19
    %p23 = pneg %p17
    %p24 = scmp.eq.s32.totalorder %s8, 1
    %p25 = por %p23, %p24
    %p26 = scmp.ne.s32.totalorder %s18, %s21
    %p27 = scmp.eq.s32.totalorder %s8, 0
    %p28 = por %p26, %p27
    %p29 = scmp.ne.s32.totalorder %s18, %s21
    %p30 = scmp.eq.s32.totalorder %s13, 1
    %p31 = por %p29, %p30
    %p32 = scmp.ne.s32.totalorder %s21, %s22
    %p33 = scmp.eq.s32.totalorder %s13, 0
    %p34 = por %p32, %p33
    %p35 = scmp.ne.s32.totalorder %s21, %s22
    %p36 = scmp.eq.s32.totalorder %s14, 1
    %p37 = por %p35, %p36
    %p39 = scmp.ne.s32.totalorder %s22, %s38
    %p40 = scmp.eq.s32.totalorder %s14, 0
    %p41 = por %p39, %p40
    %s43 = sadd.s32 %s42, 1
    %p46 = scmp.eq.s32.totalorder %s8, 1
    %p47 = scmp.ne.s32.totalorder %s42, %s44
    %p48 = scmp.eq.s32.totalorder %s8, 0
    %p49 = por %p47, %p48
    %p50 = scmp.ne.s32.totalorder %s42, %s44
    %p51 = scmp.eq.s32.totalorder %s13, 1
    %p52 = por %p50, %p51
    %p53 = scmp.ne.s32.totalorder %s44, %s45
    %p54 = scmp.eq.s32.totalorder %s13, 0
    %p55 = por %p53, %p54
    %p56 = scmp.ne.s32.totalorder %s44, %s45
    %p57 = scmp.eq.s32.totalorder %s14, 1
    %p58 = por %p56, %p57
    %p60 = scmp.ne.s32.totalorder %s45, %s59
    %p61 = scmp.eq.s32.totalorder %s14, 0
    %p62 = por %p60, %p61
    %s63 = ssub.s32 %s8, %s15
    %p64 = scmp.eq.s32.totalorder %s63, 0
    %s66 = sadd.s32 %s65, 1
    %s67 = scalar_select %p64, %s65, %s66
    %p70 = pneg %p64
    %p71 = scmp.eq.s32.totalorder %s8, 1
    %p72 = por %p70, %p71
    %p73 = scmp.ne.s32.totalorder %s65, %s68
    %p74 = scmp.eq.s32.totalorder %s8, 0
    %p75 = por %p73, %p74
    %p76 = scmp.ne.s32.totalorder %s65, %s68
    %p77 = scmp.eq.s32.totalorder %s13, 1
    %p78 = por %p76, %p77
    %p79 = scmp.ne.s32.totalorder %s68, %s69
    %p80 = scmp.eq.s32.totalorder %s13, 0
    %p81 = por %p79, %p80
    %p82 = scmp.ne.s32.totalorder %s68, %s69
    %p83 = scmp.eq.s32.totalorder %s14, 1
    %p84 = por %p82, %p83
    %p86 = scmp.ne.s32.totalorder %s69, %s85
    %p87 = scmp.eq.s32.totalorder %s14, 0
    %p88 = por %p86, %p87
    %p89 = scmp.le.s32.totalorder 1, %s8
    %p90 = scmp.lt.s32.totalorder %s8, 3
    %p91 = pnand %p89, %p90
    %p92 = pneg %p91
    // Predicated region
    $region9: #{unet_down.1} parent=5 // pred_check
      _
    $region10: #{unet_down.1} parent=5 // pred_check_branch
      %94 = sbr.rel (%p91) target = $region12
    $region11: #{unet_down.1} parent=5 // pred_region
      %s95 = ssub.s32 %s8, 1
      // Predicated region
      $region13: #{unet_down.1} parent=11 // pred_check
        %p96 = pneg %p55
      $region14: #{unet_down.1} parent=11 // pred_check_branch
        %98 = sbr.rel (%p96) target = $region16
      $region15: #{unet_down.1} parent=11 // pred_region
        _
      $region16: #{unet_down.1} parent=11 // pred_fallthru
        _
    $region12: #{unet_down.1} parent=5 // pred_fallthru
      _
    %p99 = scmp.lt.s32.totalorder %s8, 2
    // Predicated region
    $region17: #{unet_down.1} parent=5 // pred_check
      %p100 = pneg %p99
    $region18: #{unet_down.1} parent=5 // pred_check_branch
      %102 = sbr.rel (%p100) target = $region20
    $region19: #{unet_down.1} parent=5 // pred_region
      // Predicated region
      $region21: #{unet_down.1} parent=19 // pred_check
        %p103 = pneg %p28
      $region22: #{unet_down.1} parent=19 // pred_check_branch
        %105 = sbr.rel (%p103) target = $region24
      $region23: #{unet_down.1} parent=19 // pred_region
        %p106 = scmp.lt.s32.totalorder %s8, 1
        %s107 = scalar_select %p106, %s8, 1
        %s108 = smul.addr %s107, 12
        %s109 = smul.addr %s108, 4
        %s110 = scalar_lea.vmem %s0, %s109
      $region24: #{unet_down.1} parent=19 // pred_fallthru
        _
    $region20: #{unet_down.1} parent=5 // pred_fallthru
      _
    %p111 = scmp.le.s32.totalorder 1, %s8
    %p112 = scmp.lt.s32.totalorder %s8, 3
    %p113 = pnand %p111, %p112
    %p114 = pneg %p113
    // Predicated region
    $region25: #{unet_down.1} parent=5 // pred_check
      _
    $region26: #{unet_down.1} parent=5 // pred_check_branch
      %116 = sbr.rel (%p113) target = $region28
    $region27: #{unet_down.1} parent=5 // pred_region
      %s117 = ssub.s32 %s8, 1
      %p118 = scmp.lt.s32.totalorder %s13, 1
      %s119 = scalar_select %p118, %s13, 1
      %s120 = smul.addr %s119, 12
      %s121 = smul.addr %s120, 4
      %s122 = scalar_lea.vmem %s0, %s121
      %p123 = pneg %p34
      %p124 = pneg %p31
      %p125 = pneg %p55
      %p126 = pneg %p52
      %p127 = pneg %p81
      %p128 = pneg %p78
      %p129 = scmp.lt.s32.totalorder %s13, 1
      %s130 = scalar_select %p129, %s13, 1
      %s131 = smul.addr %s130, 11
      %s132 = smul.addr %s131, 8
      %s133 = scalar_lea.vmem %s2, %s132
      %p134 = scmp.lt.s32.totalorder %s13, 1
      %s135 = scalar_select %p134, %s13, 1
      %s136 = smul.addr %s135, 12
      %s137 = smul.addr %s136, 4
      %s138 = scalar_lea.vmem %s0, %s137
      %p139 = scmp.lt.s32.totalorder %s13, 1
      %s140 = scalar_select %p139, %s13, 1
      %s141 = smul.addr %s140, 11
      %s142 = smul.addr %s141, 8
      %s143 = scalar_lea.vmem %s2, %s142
      %v145 = vld [vmem:[%s138] sm:$0xf]
      %v146 = vld [vmem:[%s138 + $0x4] sm:$0xf]
      %v147 = vld [vmem:[%s138 + $0x8] sm:$0xf]
      %v148 = vld [vmem:[%s138 + $0xc] sm:$0xf]
      %v149 = vld [vmem:[%s138 + $0x10] sm:$0xf]
      %v150 = vld [vmem:[%s138 + $0x14] sm:$0xf]
      %v151 = vld [vmem:[%s138 + $0x18] sm:$0xf]
      %v152 = vld [vmem:[%s138 + $0x1c] sm:$0xf]
      %v153 = vld [vmem:[%s138 + $0x20] sm:$0xf]
      %v154 = vld [vmem:[%s138 + $0x24] sm:$0xf]
      %v155 = vld [vmem:[%s138 + $0x28] sm:$0x1]
      %v156 = vld [vmem:[%s1] sm:$0xf]
      %v157 = vld [vmem:[%s1 + $0x4] sm:$0xf]
      %s158 = scalar_lea.vmem %s1, 8
      %v159 = vld [vmem:[%s158] sm:$0xf]
      %v160 = vld [vmem:[%s158 + $0x4] sm:$0xf]
      %v172 = vunpack.c.l.b16 %v145
      %v173 = vunpack.c.l.b16 %v146
      %v174 = vunpack.c.l.b16 %v147
      %v175 = vunpack.c.l.b16 %v148
      %v176 = vunpack.c.l.b16 %v149
      %v177 = vunpack.c.l.b16 %v150
      %v178 = vunpack.c.l.b16 %v151
      %v179 = vunpack.c.l.b16 %v152
      %v180 = vunpack.c.l.b16 %v153
      %v181 = vunpack.c.l.b16 %v154
      %v182 = vunpack.c.l.b16 %v155
      %v183 = vpack.c.b16 %v173, %v172
      %v184 = vpack.c.b16 %v175, %v174
      %v185 = vpack.c.b16 %v177, %v176
      %v186 = vpack.c.b16 %v179, %v178
      %v187 = vpack.c.b16 %v181, %v180
      %v188 = vpack.c.b16 %v182, %v182
      %vm189 = vsmask.f32 7424
      %v191 = vshrl.u32 %v183, 16
      %v193 = vshll.u32 %v183, 16
      %v195 = vrot.slane %v193, 1
      %v196 = vor.u32 %v191, %v195
      %v198 = vshll.u32 %v184, 16
      %v200 = vrot.slane %v198, 1
      %v201 = vsel %vm189, %v196, %v200
      %v202 = vshrl.u32 %v184, 16
      %v204 = vor.u32 %v202, %v200
      %v206 = vshll.u32 %v185, 16
      %v208 = vrot.slane %v206, 1
      %v209 = vsel %vm189, %v204, %v208
      %v210 = vshrl.u32 %v185, 16
      %v212 = vor.u32 %v210, %v208
      %v214 = vshll.u32 %v186, 16
      %v216 = vrot.slane %v214, 1
      %v217 = vsel %vm189, %v212, %v216
      %v218 = vshrl.u32 %v186, 16
      %v220 = vor.u32 %v218, %v216
      %v222 = vshll.u32 %v187, 16
      %v224 = vrot.slane %v222, 1
      %v225 = vsel %vm189, %v220, %v224
      %v226 = vshrl.u32 %v187, 16
      %v228 = vor.u32 %v226, %v224
      %v230 = vshll.u32 %v188, 16
      %v232 = vrot.slane %v230, 1
      %v233 = vsel %vm189, %v228, %v232
      %v234 = vshrl.u32 %v188, 16
      %v238 = vunpack.c.l.b16 %v159
      %v239 = vunpack.c.l.b16 %v160
      %v240 = vpack.c.b16 %v239, %v238
      %vm242 = vcmask 130048
      %v244 = vsel %vm242, %v201, 0
      %v247 = vsel %vm242, %v209, 0
      %v250 = vsel %vm242, %v217, 0
      %v253 = vsel %vm242, %v225, 0
      %v256 = vsel %vm242, %v233, 0
      %v259 = vsel %vm242, %v234, 0
      %261 = vmatprep.subr.bf16.mxu0 0
      %262 = vmatpush1.bf16.msra.mxu0 %v240
      %263 = vmatprep.subr.bf16.mxu0 0
      %264 = vmatpush1.bf16.msra.mxu0 0
      %265 = vmatprep.subr.bf16.mxu0 0
      %266 = vmatpush1.bf16.msra.mxu0 0
      %267 = vmatprep.subr.bf16.mxu0 0
      %268 = vmatpush1.bf16.msra.mxu0 0
      %269 = vmatprep.subr.bf16.mxu0 0
      %270 = vmatpush1.bf16.msra.mxu0 0
      %271 = vmatprep.subr.bf16.mxu0 0
      %272 = vmatpush1.bf16.msra.mxu0 0
      %273 = vmatprep.subr.bf16.mxu0 0
      %274 = vmatpush1.bf16.msra.mxu0 0
      %275 = vmatprep.subr.bf16.mxu0 0
      %276 = vmatpush1.bf16.msra.mxu0 0
      %277 = vmatprep.subr.bf16.mxu0 0
      %278 = vmatpush1.bf16.msra.mxu0 0
      %279 = vmatprep.subr.bf16.mxu0 0
      %280 = vmatpush1.bf16.msra.mxu0 0
      %281 = vmatprep.subr.bf16.mxu0 0
      %282 = vmatpush1.bf16.msra.mxu0 0
      %283 = vmatprep.subr.bf16.mxu0 0
      %284 = vmatpush1.bf16.msra.mxu0 0
      %285 = vmatprep.subr.bf16.mxu0 0
      %286 = vmatpush1.bf16.msra.mxu0 0
      %287 = vmatprep.subr.bf16.mxu0 0
      %288 = vmatpush1.bf16.msra.mxu0 0
      %289 = vmatprep.subr.bf16.mxu0 0
      %290 = vmatpush1.bf16.msra.mxu0 0
      %291 = vmatprep.subr.bf16.mxu0 0
      %292 = vmatpush1.bf16.msra.mxu0 0
      %293 = vmatprep.mubr.bf16.mxu0 0
      %294 = vmatmul.mubr.bf16.gmra.mrb[0].mxu0 %v244
      %v295 = vpop.f32.mrb[0].mxu0
      %v296 = vadd.f32 0.0, %v295
      %v297 = vpop.f32.mrb[0].mxu0
      %v298 = vpop.f32.mrb[0].mxu0
      %v299 = vadd.f32 0.0, %v298
      %v300 = vpop.f32.mrb[0].mxu0
      %301 = vmatprep.mubr.bf16.mxu0 0
      %302 = vmatmul.mubr.bf16.gmra.mrb[0].mxu0 %v247
      %v303 = vpop.f32.mrb[0].mxu0
      %v304 = vadd.f32 0.0, %v303
      %v305 = vpop.f32.mrb[0].mxu0
      %v306 = vpop.f32.mrb[0].mxu0
      %v307 = vadd.f32 0.0, %v306
      %v308 = vpop.f32.mrb[0].mxu0
      %309 = vmatprep.mubr.bf16.mxu0 0
      %310 = vmatmul.mubr.bf16.gmra.mrb[0].mxu0 %v250
      %v311 = vpop.f32.mrb[0].mxu0
      %v312 = vadd.f32 0.0, %v311
      %v313 = vpop.f32.mrb[0].mxu0
      %v314 = vpop.f32.mrb[0].mxu0
      %v315 = vadd.f32 0.0, %v314
      %v316 = vpop.f32.mrb[0].mxu0
      %317 = vmatprep.mubr.bf16.mxu0 0
      %318 = vmatmul.mubr.bf16.gmra.mrb[0].mxu0 %v253
      %v319 = vpop.f32.mrb[0].mxu0
      %v320 = vadd.f32 0.0, %v319
      %v321 = vpop.f32.mrb[0].mxu0
      %v322 = vpop.f32.mrb[0].mxu0
      %v323 = vadd.f32 0.0, %v322
      %v324 = vpop.f32.mrb[0].mxu0
      %325 = vmatprep.mubr.bf16.mxu0 0
      %326 = vmatmul.mubr.bf16.gmra.mrb[0].mxu0 %v256
      %v327 = vpop.f32.mrb[0].mxu0
      %v328 = vadd.f32 0.0, %v327
      %v329 = vpop.f32.mrb[0].mxu0
      %v330 = vpop.f32.mrb[0].mxu0
      %v331 = vadd.f32 0.0, %v330
      %v332 = vpop.f32.mrb[0].mxu0
      %333 = vmatprep.mubr.bf16.mxu0 0
      %334 = vmatmul.mubr.bf16.gmra.mrb[0].mxu0 %v259
      %v335 = vpop.f32.mrb[0].mxu0
      %v336 = vadd.f32 0.0, %v335
      %v337 = vpop.f32.mrb[0].mxu0
      %v338 = vpop.f32.mrb[0].mxu0
      %v339 = vpop.f32.mrb[0].mxu0
      %340 = vdwg.mxu0
      %v343 = vunpack.c.l.b16 %v156
      %v344 = vunpack.c.l.b16 %v157
      %v345 = vpack.c.b16 %v344, %v343
      %v347 = vsel %vm242, %v183, 0
      %v349 = vsel %vm242, %v184, 0
      %v351 = vsel %vm242, %v185, 0
      %v353 = vsel %vm242, %v186, 0
      %v355 = vsel %vm242, %v187, 0
      %v357 = vsel %vm242, %v188, 0
      %359 = vmatprep.subr.bf16.mxu0 0
      %360 = vmatpush1.bf16.msra.mxu0 %v345
      %361 = vmatprep.subr.bf16.mxu0 0
      %362 = vmatpush1.bf16.msra.mxu0 0
      %363 = vmatprep.subr.bf16.mxu0 0
      %364 = vmatpush1.bf16.msra.mxu0 0
      %365 = vmatprep.subr.bf16.mxu0 0
      %366 = vmatpush1.bf16.msra.mxu0 0
      %367 = vmatprep.subr.bf16.mxu0 0
      %368 = vmatpush1.bf16.msra.mxu0 0
      %369 = vmatprep.subr.bf16.mxu0 0
      %370 = vmatpush1.bf16.msra.mxu0 0
      %371 = vmatprep.subr.bf16.mxu0 0
      %372 = vmatpush1.bf16.msra.mxu0 0
      %373 = vmatprep.subr.bf16.mxu0 0
      %374 = vmatpush1.bf16.msra.mxu0 0
      %375 = vmatprep.subr.bf16.mxu0 0
      %376 = vmatpush1.bf16.msra.mxu0 0
      %377 = vmatprep.subr.bf16.mxu0 0
      %378 = vmatpush1.bf16.msra.mxu0 0
      %379 = vmatprep.subr.bf16.mxu0 0
      %380 = vmatpush1.bf16.msra.mxu0 0
      %381 = vmatprep.subr.bf16.mxu0 0
      %382 = vmatpush1.bf16.msra.mxu0 0
      %383 = vmatprep.subr.bf16.mxu0 0
      %384 = vmatpush1.bf16.msra.mxu0 0
      %385 = vmatprep.subr.bf16.mxu0 0
      %386 = vmatpush1.bf16.msra.mxu0 0
      %387 = vmatprep.subr.bf16.mxu0 0
      %388 = vmatpush1.bf16.msra.mxu0 0
      %389 = vmatprep.subr.bf16.mxu0 0
      %390 = vmatpush1.bf16.msra.mxu0 0
      %391 = vmatprep.mubr.bf16.mxu0 0
      %392 = vmatmul.mubr.bf16.gmra.mrb[0].mxu0 %v347
      %v393 = vpop.f32.mrb[0].mxu0
      %v394 = vadd.f32 %v296, %v393
      %v395 = vpop.f32.mrb[0].mxu0
      %v396 = vpop.f32.mrb[0].mxu0
      %v397 = vadd.f32 %v299, %v396
      %v398 = vpop.f32.mrb[0].mxu0
      %399 = vmatprep.mubr.bf16.mxu0 0
      %400 = vmatmul.mubr.bf16.gmra.mrb[0].mxu0 %v349
      %v401 = vpop.f32.mrb[0].mxu0
      %v402 = vadd.f32 %v304, %v401
      %v403 = vpop.f32.mrb[0].mxu0
      %v404 = vpop.f32.mrb[0].mxu0
      %v405 = vadd.f32 %v307, %v404
      %v406 = vpop.f32.mrb[0].mxu0
      %407 = vmatprep.mubr.bf16.mxu0 0
      %408 = vmatmul.mubr.bf16.gmra.mrb[0].mxu0 %v351
      %v409 = vpop.f32.mrb[0].mxu0
      %v410 = vadd.f32 %v312, %v409
      %v411 = vpop.f32.mrb[0].mxu0
      %v412 = vpop.f32.mrb[0].mxu0
      %v413 = vadd.f32 %v315, %v412
      %v414 = vpop.f32.mrb[0].mxu0
      %415 = vmatprep.mubr.bf16.mxu0 0
      %416 = vmatmul.mubr.bf16.gmra.mrb[0].mxu0 %v353
      %v417 = vpop.f32.mrb[0].mxu0
      %v418 = vadd.f32 %v320, %v417
      %v419 = vpop.f32.mrb[0].mxu0
      %v420 = vpop.f32.mrb[0].mxu0
      %v421 = vadd.f32 %v323, %v420
      %v422 = vpop.f32.mrb[0].mxu0
      %423 = vmatprep.mubr.bf16.mxu0 0
      %424 = vmatmul.mubr.bf16.gmra.mrb[0].mxu0 %v355
      %v425 = vpop.f32.mrb[0].mxu0
      %v426 = vadd.f32 %v328, %v425
      %v427 = vpop.f32.mrb[0].mxu0
      %v428 = vpop.f32.mrb[0].mxu0
      %v429 = vadd.f32 %v331, %v428
      %v430 = vpop.f32.mrb[0].mxu0
      %431 = vmatprep.mubr.bf16.mxu0 0
      %432 = vmatmul.mubr.bf16.gmra.mrb[0].mxu0 %v357
      %v433 = vpop.f32.mrb[0].mxu0
      %v434 = vadd.f32 %v336, %v433
      %v435 = vpop.f32.mrb[0].mxu0
      %v436 = vpop.f32.mrb[0].mxu0
      %v437 = vpop.f32.mrb[0].mxu0
      %438 = vdwg.mxu0
      %v439 = vld [vmem:[%s138 + $0x4] sm:$0xf]
      %v440 = vld [vmem:[%s138 + $0x8] sm:$0xf]
      %v441 = vld [vmem:[%s138 + $0xc] sm:$0xf]
      %v442 = vld [vmem:[%s138 + $0x10] sm:$0xf]
      %v443 = vld [vmem:[%s138 + $0x14] sm:$0xf]
      %v444 = vld [vmem:[%s138 + $0x18] sm:$0xf]
      %v445 = vld [vmem:[%s138 + $0x1c] sm:$0xf]
      %v446 = vld [vmem:[%s138 + $0x20] sm:$0xf]
      %v447 = vld [vmem:[%s138 + $0x24] sm:$0xf]
      %v448 = vld [vmem:[%s138 + $0x28] sm:$0xf]
      %v449 = vld [vmem:[%s138 + $0x2c] sm:$0x1]
      %s450 = scalar_lea.vmem %s1, 16
      %v451 = vld [vmem:[%s450] sm:$0xf]
      %v452 = vld [vmem:[%s450 + $0x4] sm:$0xf]
      %v464 = vunpack.c.l.b16 %v439
      %v465 = vunpack.c.l.b16 %v440
      %v466 = vunpack.c.l.b16 %v441
      %v467 = vunpack.c.l.b16 %v442
      %v468 = vunpack.c.l.b16 %v443
      %v469 = vunpack.c.l.b16 %v444
      %v470 = vunpack.c.l.b16 %v445
      %v471 = vunpack.c.l.b16 %v446
      %v472 = vunpack.c.l.b16 %v447
      %v473 = vunpack.c.l.b16 %v448
      %v474 = vunpack.c.l.b16 %v449
      %v475 = vpack.c.b16 %v465, %v464
      %v476 = vpack.c.b16 %v467, %v466
      %v477 = vpack.c.b16 %v469, %v468
      %v478 = vpack.c.b16 %v471, %v470
      %v479 = vpack.c.b16 %v473, %v472
      %v480 = vpack.c.b16 %v474, %v474
      %v482 = vshrl.u32 %v475, 16
      %v484 = vshll.u32 %v475, 16
      %v486 = vrot.slane %v484, 1
      %v487 = vor.u32 %v482, %v486
      %v489 = vshll.u32 %v476, 16
      %v491 = vrot.slane %v489, 1
      %v492 = vsel %vm189, %v487, %v491
      %v493 = vshrl.u32 %v476, 16
      %v495 = vor.u32 %v493, %v491
      %v497 = vshll.u32 %v477, 16
      %v499 = vrot.slane %v497, 1
      %v500 = vsel %vm189, %v495, %v499
      %v501 = vshrl.u32 %v477, 16
      %v503 = vor.u32 %v501, %v499
      %v505 = vshll.u32 %v478, 16
      %v507 = vrot.slane %v505, 1
      %v508 = vsel %vm189, %v503, %v507
      %v509 = vshrl.u32 %v478, 16
      %v511 = vor.u32 %v509, %v507
      %v513 = vshll.u32 %v479, 16
      %v515 = vrot.slane %v513, 1
      %v516 = vsel %vm189, %v511, %v515
      %v517 = vshrl.u32 %v479, 16
      %v519 = vor.u32 %v517, %v515
      %v521 = vshll.u32 %v480, 16
      %v523 = vrot.slane %v521, 1
      %v524 = vsel %vm189, %v519, %v523
      %v525 = vshrl.u32 %v480, 16
      %v529 = vunpack.c.l.b16 %v451
      %v530 = vunpack.c.l.b16 %v452
      %v531 = vpack.c.b16 %v530, %v529
      %v534 = vsel %vm242, %v492, 0
      %v537 = vsel %vm242, %v500, 0
      %v540 = vsel %vm242, %v508, 0
      %v543 = vsel %vm242, %v516, 0
      %v546 = vsel %vm242, %v524, 0
      %v549 = vsel %vm242, %v525, 0
      %551 = vmatprep.subr.bf16.mxu0 0
      %552 = vmatpush1.bf16.msra.mxu0 %v531
      %553 = vmatprep.subr.bf16.mxu0 0
      %554 = vmatpush1.bf16.msra.mxu0 0
      %555 = vmatprep.subr.bf16.mxu0 0
      %556 = vmatpush1.bf16.msra.mxu0 0
      %557 = vmatprep.subr.bf16.mxu0 0
      %558 = vmatpush1.bf16.msra.mxu0 0
      %559 = vmatprep.subr.bf16.mxu0 0
      %560 = vmatpush1.bf16.msra.mxu0 0
      %561 = vmatprep.subr.bf16.mxu0 0
      %562 = vmatpush1.bf16.msra.mxu0 0
      %563 = vmatprep.subr.bf16.mxu0 0
      %564 = vmatpush1.bf16.msra.mxu0 0
      %565 = vmatprep.subr.bf16.mxu0 0
      %566 = vmatpush1.bf16.msra.mxu0 0
      %567 = vmatprep.subr.bf16.mxu0 0
      %568 = vmatpush1.bf16.msra.mxu0 0
      %569 = vmatprep.subr.bf16.mxu0 0
      %570 = vmatpush1.bf16.msra.mxu0 0
      %571 = vmatprep.subr.bf16.mxu0 0
      %572 = vmatpush1.bf16.msra.mxu0 0
      %573 = vmatprep.subr.bf16.mxu0 0
      %574 = vmatpush1.bf16.msra.mxu0 0
      %575 = vmatprep.subr.bf16.mxu0 0
      %576 = vmatpush1.bf16.msra.mxu0 0
      %577 = vmatprep.subr.bf16.mxu0 0
      %578 = vmatpush1.bf16.msra.mxu0 0
      %579 = vmatprep.subr.bf16.mxu0 0
      %580 = vmatpush1.bf16.msra.mxu0 0
      %581 = vmatprep.subr.bf16.mxu0 0
      %582 = vmatpush1.bf16.msra.mxu0 0
      %583 = vmatprep.mubr.bf16.mxu0 0
      %584 = vmatmul.mubr.bf16.gmra.mrb[0].mxu0 %v534
      %v585 = vpop.f32.mrb[0].mxu0
      %v586 = vadd.f32 0.0, %v585
      %v587 = vpop.f32.mrb[0].mxu0
      %v588 = vpop.f32.mrb[0].mxu0
      %v589 = vadd.f32 0.0, %v588
      %v590 = vpop.f32.mrb[0].mxu0
      %591 = vmatprep.mubr.bf16.mxu0 0
      %592 = vmatmul.mubr.bf16.gmra.mrb[0].mxu0 %v537
      %v593 = vpop.f32.mrb[0].mxu0
      %v594 = vadd.f32 0.0, %v593
      %v595 = vpop.f32.mrb[0].mxu0
      %v596 = vpop.f32.mrb[0].mxu0
      %v597 = vadd.f32 0.0, %v596
      %v598 = vpop.f32.mrb[0].mxu0
      %599 = vmatprep.mubr.bf16.mxu0 0
      %600 = vmatmul.mubr.bf16.gmra.mrb[0].mxu0 %v540
      %v601 = vpop.f32.mrb[0].mxu0
      %v602 = vadd.f32 0.0, %v601
      %v603 = vpop.f32.mrb[0].mxu0
      %v604 = vpop.f32.mrb[0].mxu0
      %v605 = vadd.f32 0.0, %v604
      %v606 = vpop.f32.mrb[0].mxu0
      %607 = vmatprep.mubr.bf16.mxu0 0
      %608 = vmatmul.mubr.bf16.gmra.mrb[0].mxu0 %v543
      %v609 = vpop.f32.mrb[0].mxu0
      %v610 = vadd.f32 0.0, %v609
      %v611 = vpop.f32.mrb[0].mxu0
      %v612 = vpop.f32.mrb[0].mxu0
      %v613 = vadd.f32 0.0, %v612
      %v614 = vpop.f32.mrb[0].mxu0
      %615 = vmatprep.mubr.bf16.mxu0 0
      %616 = vmatmul.mubr.bf16.gmra.mrb[0].mxu0 %v546
      %v617 = vpop.f32.mrb[0].mxu0
      %v618 = vadd.f32 0.0, %v617
      %v619 = vpop.f32.mrb[0].mxu0
      %v620 = vpop.f32.mrb[0].mxu0
      %v621 = vadd.f32 0.0, %v620
      %v622 = vpop.f32.mrb[0].mxu0
      %623 = vmatprep.mubr.bf16.mxu0 0
      %624 = vmatmul.mubr.bf16.gmra.mrb[0].mxu0 %v549
      %v625 = vpop.f32.mrb[0].mxu0
      %v626 = vadd.f32 0.0, %v625
      %v627 = vpop.f32.mrb[0].mxu0
      %v628 = vpop.f32.mrb[0].mxu0
      %v629 = vpop.f32.mrb[0].mxu0
      %630 = vdwg.mxu0
      %v631 = vadd.f32 %v394, %v586
      %v632 = vadd.f32 %v397, %v589
      %v633 = vadd.f32 %v402, %v594
      %v634 = vadd.f32 %v405, %v597
      %v635 = vadd.f32 %v410, %v602
      %v636 = vadd.f32 %v413, %v605
      %v637 = vadd.f32 %v418, %v610
      %v638 = vadd.f32 %v421, %v613
      %v639 = vadd.f32 %v426, %v618
      %v640 = vadd.f32 %v429, %v621
      %v641 = vadd.f32 %v434, %v626
      %v642 = vld [vmem:[%s138 + $0x4] sm:$0xe]
      %v643 = vld [vmem:[%s138 + $0x2c] sm:$0x3]
      %s644 = scalar_lea.vmem %s1, 24
      %v645 = vld [vmem:[%s644] sm:$0xf]
      %v646 = vld [vmem:[%s644 + $0x4] sm:$0xf]
      %v649 = vunpack.c.l.b16 %v642
      %v650 = vunpack.c.l.b16 %v643
      %v651 = vpack.c.b16 %v465, %v649
      %v652 = vpack.c.b16 %v650, %v650
      %vm653 = vcmask 1046528
      %v654 = vrot.slane %v651, 1
      %v655 = vrot.slane %v476, 1
      %v656 = vsel %vm653, %v654, %v655
      %v657 = vrot.slane %v477, 1
      %v658 = vsel %vm653, %v655, %v657
      %v659 = vrot.slane %v478, 1
      %v660 = vsel %vm653, %v657, %v659
      %v661 = vrot.slane %v479, 1
      %v662 = vsel %vm653, %v659, %v661
      %v663 = vrot.slane %v652, 1
      %v664 = vsel %vm653, %v661, %v663
      %v667 = vunpack.c.l.b16 %v645
      %v668 = vunpack.c.l.b16 %v646
      %v669 = vpack.c.b16 %v668, %v667
      %v672 = vsel %vm242, %v656, 0
      %v675 = vsel %vm242, %v658, 0
      %v678 = vsel %vm242, %v660, 0
      %v681 = vsel %vm242, %v662, 0
      %v684 = vsel %vm242, %v664, 0
      %v687 = vsel %vm242, %v663, 0
      %689 = vmatprep.subr.bf16.mxu0 0
      %690 = vmatpush1.bf16.msra.mxu0 %v669
      %691 = vmatprep.subr.bf16.mxu0 0
      %692 = vmatpush1.bf16.msra.mxu0 0
      %693 = vmatprep.subr.bf16.mxu0 0
      %694 = vmatpush1.bf16.msra.mxu0 0
      %695 = vmatprep.subr.bf16.mxu0 0
      %696 = vmatpush1.bf16.msra.mxu0 0
      %697 = vmatprep.subr.bf16.mxu0 0
      %698 = vmatpush1.bf16.msra.mxu0 0
      %699 = vmatprep.subr.bf16.mxu0 0
      %700 = vmatpush1.bf16.msra.mxu0 0
      %701 = vmatprep.subr.bf16.mxu0 0
      %702 = vmatpush1.bf16.msra.mxu0 0
      %703 = vmatprep.subr.bf16.mxu0 0
      %704 = vmatpush1.bf16.msra.mxu0 0
      %705 = vmatprep.subr.bf16.mxu0 0
      %706 = vmatpush1.bf16.msra.mxu0 0
      %707 = vmatprep.subr.bf16.mxu0 0
      %708 = vmatpush1.bf16.msra.mxu0 0
      %709 = vmatprep.subr.bf16.mxu0 0
      %710 = vmatpush1.bf16.msra.mxu0 0
      %711 = vmatprep.subr.bf16.mxu0 0
      %712 = vmatpush1.bf16.msra.mxu0 0
      %713 = vmatprep.subr.bf16.mxu0 0
      %714 = vmatpush1.bf16.msra.mxu0 0
      %715 = vmatprep.subr.bf16.mxu0 0
      %716 = vmatpush1.bf16.msra.mxu0 0
      %717 = vmatprep.subr.bf16.mxu0 0
      %718 = vmatpush1.bf16.msra.mxu0 0
      %719 = vmatprep.subr.bf16.mxu0 0
      %720 = vmatpush1.bf16.msra.mxu0 0
      %721 = vmatprep.mubr.bf16.mxu0 0
      %722 = vmatmul.mubr.bf16.gmra.mrb[0].mxu0 %v672
      %v723 = vpop.f32.mrb[0].mxu0
      %v724 = vadd.f32 0.0, %v723
      %v725 = vpop.f32.mrb[0].mxu0
      %v726 = vpop.f32.mrb[0].mxu0
      %v727 = vadd.f32 0.0, %v726
      %v728 = vpop.f32.mrb[0].mxu0
      %729 = vmatprep.mubr.bf16.mxu0 0
      %730 = vmatmul.mubr.bf16.gmra.mrb[0].mxu0 %v675
      %v731 = vpop.f32.mrb[0].mxu0
      %v732 = vadd.f32 0.0, %v731
      %v733 = vpop.f32.mrb[0].mxu0
      %v734 = vpop.f32.mrb[0].mxu0
      %v735 = vadd.f32 0.0, %v734
      %v736 = vpop.f32.mrb[0].mxu0
      %737 = vmatprep.mubr.bf16.mxu0 0
      %738 = vmatmul.mubr.bf16.gmra.mrb[0].mxu0 %v678
      %v739 = vpop.f32.mrb[0].mxu0
      %v740 = vadd.f32 0.0, %v739
      %v741 = vpop.f32.mrb[0].mxu0
      %v742 = vpop.f32.mrb[0].mxu0
      %v743 = vadd.f32 0.0, %v742
      %v744 = vpop.f32.mrb[0].mxu0
      %745 = vmatprep.mubr.bf16.mxu0 0
      %746 = vmatmul.mubr.bf16.gmra.mrb[0].mxu0 %v681
      %v747 = vpop.f32.mrb[0].mxu0
      %v748 = vadd.f32 0.0, %v747
      %v749 = vpop.f32.mrb[0].mxu0
      %v750 = vpop.f32.mrb[0].mxu0
      %v751 = vadd.f32 0.0, %v750
      %v752 = vpop.f32.mrb[0].mxu0
      %753 = vmatprep.mubr.bf16.mxu0 0
      %754 = vmatmul.mubr.bf16.gmra.mrb[0].mxu0 %v684
      %v755 = vpop.f32.mrb[0].mxu0
      %v756 = vadd.f32 0.0, %v755
      %v757 = vpop.f32.mrb[0].mxu0
      %v758 = vpop.f32.mrb[0].mxu0
      %v759 = vadd.f32 0.0, %v758
      %v760 = vpop.f32.mrb[0].mxu0
      %761 = vmatprep.mubr.bf16.mxu0 0
      %762 = vmatmul.mubr.bf16.gmra.mrb[0].mxu0 %v687
      %v763 = vpop.f32.mrb[0].mxu0
      %v764 = vadd.f32 0.0, %v763
      %v765 = vpop.f32.mrb[0].mxu0
      %v766 = vpop.f32.mrb[0].mxu0
      %v767 = vpop.f32.mrb[0].mxu0
      %768 = vdwg.mxu0
      %v769 = vadd.f32 %v631, %v724
      %v770 = vadd.f32 %v632, %v727
      %v771 = vadd.f32 %v633, %v732
      %v772 = vadd.f32 %v634, %v735
      %v773 = vadd.f32 %v635, %v740
      %v774 = vadd.f32 %v636, %v743
      %v775 = vadd.f32 %v637, %v748
      %v776 = vadd.f32 %v638, %v751
      %v777 = vadd.f32 %v639, %v756
      %v778 = vadd.f32 %v640, %v759
      %v779 = vadd.f32 %v641, %v764
      %v780 = vlaneseq
      %v781 = vshrl.u32 %v780, 7
      %v782 = vadd.s32 %v781, 8
      %v783 = vadd.s32 %v781, 16
      %v784 = vadd.s32 %v781, 24
      %v785 = vadd.s32 %v781, 32
      %v786 = vadd.s32 %v781, 40
      %v787 = vadd.s32 %v781, 48
      %v788 = vadd.s32 %v781, 56
      %v789 = vadd.s32 %v781, 64
      %v790 = vadd.s32 %v781, 72
      %v791 = vadd.s32 %v781, 80
      %vm792 = vcmp.lt.s32.totalorder %v781, 0
      %v793 = vsub.s32 0, %v781
      %v794 = vsel %vm792, %v793, %v781
      %v795 = vmul.u32.u64.compose %v794, 3817748708
      %v796 = vextract.low.u32 %v795
      %v797 = vextract.high.u32 %v795
      %v798 = vshrl.u32 %v797, 3
      %v799 = vmul.u32 %v798, 9
      %v800 = vsub.s32 %v794, %v799
      %v801 = vsub.s32 0, %v800
      %v802 = vsel %vm792, %v801, %v800
      %vm803 = vcmp.lt.s32.totalorder %v782, 0
      %v804 = vsub.s32 0, %v782
      %v805 = vsel %vm803, %v804, %v782
      %v806 = vmul.u32.u64.compose %v805, 3817748708
      %v807 = vextract.low.u32 %v806
      %v808 = vextract.high.u32 %v806
      %v809 = vshrl.u32 %v808, 3
      %v810 = vmul.u32 %v809, 9
      %v811 = vsub.s32 %v805, %v810
      %v812 = vsub.s32 0, %v811
      %v813 = vsel %vm803, %v812, %v811
      %vm814 = vcmp.lt.s32.totalorder %v783, 0
      %v815 = vsub.s32 0, %v783
      %v816 = vsel %vm814, %v815, %v783
      %v817 = vmul.u32.u64.compose %v816, 3817748708
      %v818 = vextract.low.u32 %v817
      %v819 = vextract.high.u32 %v817
      %v820 = vshrl.u32 %v819, 3
      %v821 = vmul.u32 %v820, 9
      %v822 = vsub.s32 %v816, %v821
      %v823 = vsub.s32 0, %v822
      %v824 = vsel %vm814, %v823, %v822
      %vm825 = vcmp.lt.s32.totalorder %v784, 0
      %v826 = vsub.s32 0, %v784
      %v827 = vsel %vm825, %v826, %v784
      %v828 = vmul.u32.u64.compose %v827, 3817748708
      %v829 = vextract.low.u32 %v828
      %v830 = vextract.high.u32 %v828
      %v831 = vshrl.u32 %v830, 3
      %v832 = vmul.u32 %v831, 9
      %v833 = vsub.s32 %v827, %v832
      %v834 = vsub.s32 0, %v833
      %v835 = vsel %vm825, %v834, %v833
      %vm836 = vcmp.lt.s32.totalorder %v785, 0
      %v837 = vsub.s32 0, %v785
      %v838 = vsel %vm836, %v837, %v785
      %v839 = vmul.u32.u64.compose %v838, 3817748708
      %v840 = vextract.low.u32 %v839
      %v841 = vextract.high.u32 %v839
      %v842 = vshrl.u32 %v841, 3
      %v843 = vmul.u32 %v842, 9
      %v844 = vsub.s32 %v838, %v843
      %v845 = vsub.s32 0, %v844
      %v846 = vsel %vm836, %v845, %v844
      %vm847 = vcmp.lt.s32.totalorder %v786, 0
      %v848 = vsub.s32 0, %v786
      %v849 = vsel %vm847, %v848, %v786
      %v850 = vmul.u32.u64.compose %v849, 3817748708
      %v851 = vextract.low.u32 %v850
      %v852 = vextract.high.u32 %v850
      %v853 = vshrl.u32 %v852, 3
      %v854 = vmul.u32 %v853, 9
      %v855 = vsub.s32 %v849, %v854
      %v856 = vsub.s32 0, %v855
      %v857 = vsel %vm847, %v856, %v855
      %vm858 = vcmp.lt.s32.totalorder %v787, 0
      %v859 = vsub.s32 0, %v787
      %v860 = vsel %vm858, %v859, %v787
      %v861 = vmul.u32.u64.compose %v860, 3817748708
      %v862 = vextract.low.u32 %v861
      %v863 = vextract.high.u32 %v861
      %v864 = vshrl.u32 %v863, 3
      %v865 = vmul.u32 %v864, 9
      %v866 = vsub.s32 %v860, %v865
      %v867 = vsub.s32 0, %v866
      %v868 = vsel %vm858, %v867, %v866
      %vm869 = vcmp.lt.s32.totalorder %v788, 0
      %v870 = vsub.s32 0, %v788
      %v871 = vsel %vm869, %v870, %v788
      %v872 = vmul.u32.u64.compose %v871, 3817748708
      %v873 = vextract.low.u32 %v872
      %v874 = vextract.high.u32 %v872
      %v875 = vshrl.u32 %v874, 3
      %v876 = vmul.u32 %v875, 9
      %v877 = vsub.s32 %v871, %v876
      %v878 = vsub.s32 0, %v877
      %v879 = vsel %vm869, %v878, %v877
      %vm880 = vcmp.lt.s32.totalorder %v789, 0
      %v881 = vsub.s32 0, %v789
      %v882 = vsel %vm880, %v881, %v789
      %v883 = vmul.u32.u64.compose %v882, 3817748708
      %v884 = vextract.low.u32 %v883
      %v885 = vextract.high.u32 %v883
      %v886 = vshrl.u32 %v885, 3
      %v887 = vmul.u32 %v886, 9
      %v888 = vsub.s32 %v882, %v887
      %v889 = vsub.s32 0, %v888
      %v890 = vsel %vm880, %v889, %v888
      %vm891 = vcmp.lt.s32.totalorder %v790, 0
      %v892 = vsub.s32 0, %v790
      %v893 = vsel %vm891, %v892, %v790
      %v894 = vmul.u32.u64.compose %v893, 3817748708
      %v895 = vextract.low.u32 %v894
      %v896 = vextract.high.u32 %v894
      %v897 = vshrl.u32 %v896, 3
      %v898 = vmul.u32 %v897, 9
      %v899 = vsub.s32 %v893, %v898
      %v900 = vsub.s32 0, %v899
      %v901 = vsel %vm891, %v900, %v899
      %vm902 = vcmp.lt.s32.totalorder %v791, 0
      %v903 = vsub.s32 0, %v791
      %v904 = vsel %vm902, %v903, %v791
      %v905 = vmul.u32.u64.compose %v904, 3817748708
      %v906 = vextract.low.u32 %v905
      %v907 = vextract.high.u32 %v905
      %v908 = vshrl.u32 %v907, 3
      %v909 = vmul.u32 %v908, 9
      %v910 = vsub.s32 %v904, %v909
      %v911 = vsub.s32 0, %v910
      %v912 = vsel %vm902, %v911, %v910
      %vm913 = vcmp.ne.s32.totalorder %v802, 0
      %vm914 = vcmp.ne.s32.totalorder %v813, 0
      %vm915 = vcmp.ne.s32.totalorder %v824, 0
      %vm916 = vcmp.ne.s32.totalorder %v835, 0
      %vm917 = vcmp.ne.s32.totalorder %v846, 0
      %vm918 = vcmp.ne.s32.totalorder %v857, 0
      %vm919 = vcmp.ne.s32.totalorder %v868, 0
      %vm920 = vcmp.ne.s32.totalorder %v879, 0
      %vm921 = vcmp.ne.s32.totalorder %v890, 0
      %vm922 = vcmp.ne.s32.totalorder %v901, 0
      %vm923 = vcmp.ne.s32.totalorder %v912, 0
      %vm924 = vcmp.lt.s32.totalorder %v802, 0
      %vm925 = vcmp.lt.s32.totalorder %v813, 0
      %vm926 = vcmp.lt.s32.totalorder %v824, 0
      %vm927 = vcmp.lt.s32.totalorder %v835, 0
      %vm928 = vcmp.lt.s32.totalorder %v846, 0
      %vm929 = vcmp.lt.s32.totalorder %v857, 0
      %vm930 = vcmp.lt.s32.totalorder %v868, 0
      %vm931 = vcmp.lt.s32.totalorder %v879, 0
      %vm932 = vcmp.lt.s32.totalorder %v890, 0
      %vm933 = vcmp.lt.s32.totalorder %v901, 0
      %vm934 = vcmp.lt.s32.totalorder %v912, 0
      %vm935 = vmand %vm924, %vm913
      %vm936 = vmand %vm925, %vm914
      %vm937 = vmand %vm926, %vm915
      %vm938 = vmand %vm927, %vm916
      %vm939 = vmand %vm928, %vm917
      %vm940 = vmand %vm929, %vm918
      %vm941 = vmand %vm930, %vm919
      %vm942 = vmand %vm931, %vm920
      %vm943 = vmand %vm932, %vm921
      %vm944 = vmand %vm933, %vm922
      %vm945 = vmand %vm934, %vm923
      %v946 = vadd.s32 %v802, 9
      %v947 = vadd.s32 %v813, 9
      %v948 = vadd.s32 %v824, 9
      %v949 = vadd.s32 %v835, 9
      %v950 = vadd.s32 %v846, 9
      %v951 = vadd.s32 %v857, 9
      %v952 = vadd.s32 %v868, 9
      %v953 = vadd.s32 %v879, 9
      %v954 = vadd.s32 %v890, 9
      %v955 = vadd.s32 %v901, 9
      %v956 = vadd.s32 %v912, 9
      %v957 = vsel %vm935, %v946, %v802
      %v958 = vsel %vm936, %v947, %v813
      %v959 = vsel %vm937, %v948, %v824
      %v960 = vsel %vm938, %v949, %v835
      %v961 = vsel %vm939, %v950, %v846
      %v962 = vsel %vm940, %v951, %v857
      %v963 = vsel %vm941, %v952, %v868
      %v964 = vsel %vm942, %v953, %v879
      %v965 = vsel %vm943, %v954, %v890
      %v966 = vsel %vm944, %v955, %v901
      %v967 = vsel %vm945, %v956, %v912
      %vm968 = vcmp.lt.s32.totalorder %v957, 8
      %vm969 = vcmp.lt.s32.totalorder %v958, 8
      %vm970 = vcmp.lt.s32.totalorder %v959, 8
      %vm971 = vcmp.lt.s32.totalorder %v960, 8
      %vm972 = vcmp.lt.s32.totalorder %v961, 8
      %vm973 = vcmp.lt.s32.totalorder %v962, 8
      %vm974 = vcmp.lt.s32.totalorder %v963, 8
      %vm975 = vcmp.lt.s32.totalorder %v964, 8
      %vm976 = vcmp.lt.s32.totalorder %v965, 8
      %vm977 = vcmp.lt.s32.totalorder %v966, 8
      %vm978 = vcmp.lt.s32.totalorder %v967, 8
      %vm979 = vcmp.lt.s32.totalorder %v781, 72
      %vm980 = vcmp.lt.s32.totalorder %v782, 72
      %vm981 = vcmp.lt.s32.totalorder %v783, 72
      %vm982 = vcmp.lt.s32.totalorder %v784, 72
      %vm983 = vcmp.lt.s32.totalorder %v785, 72
      %vm984 = vcmp.lt.s32.totalorder %v786, 72
      %vm985 = vcmp.lt.s32.totalorder %v787, 72
      %vm986 = vcmp.lt.s32.totalorder %v788, 72
      %vm987 = vcmp.lt.s32.totalorder %v789, 72
      %vm988 = vcmp.lt.s32.totalorder %v790, 72
      %vm989 = vcmp.lt.s32.totalorder %v791, 72
      %vm990 = vmand %vm968, %vm979
      %vm991 = vmand %vm969, %vm980
      %vm992 = vmand %vm970, %vm981
      %vm993 = vmand %vm971, %vm982
      %vm994 = vmand %vm972, %vm983
      %vm995 = vmand %vm973, %vm984
      %vm996 = vmand %vm974, %vm985
      %vm997 = vmand %vm975, %vm986
      %vm998 = vmand %vm976, %vm987
      %vm999 = vmand %vm977, %vm988
      %vm1000 = vmand %vm978, %vm989
      %v1001 = vsel %vm990, 1, 0
      %v1002 = vsel %vm991, 1, 0
      %v1003 = vsel %vm992, 1, 0
      %v1004 = vsel %vm993, 1, 0
      %v1005 = vsel %vm994, 1, 0
      %v1006 = vsel %vm995, 1, 0
      %v1007 = vsel %vm996, 1, 0
      %v1008 = vsel %vm997, 1, 0
      %v1009 = vsel %vm998, 1, 0
      %v1010 = vsel %vm999, 1, 0
      %v1011 = vsel %vm1000, 1, 0
      %vm1012 = vcmp.eq.s32.totalorder %v1001, 1
      %vm1013 = vcmp.eq.s32.totalorder %v1002, 1
      %vm1014 = vcmp.eq.s32.totalorder %v1003, 1
      %vm1015 = vcmp.eq.s32.totalorder %v1004, 1
      %vm1016 = vcmp.eq.s32.totalorder %v1005, 1
      %vm1017 = vcmp.eq.s32.totalorder %v1006, 1
      %vm1018 = vcmp.eq.s32.totalorder %v1007, 1
      %vm1019 = vcmp.eq.s32.totalorder %v1008, 1
      %vm1020 = vcmp.eq.s32.totalorder %v1009, 1
      %vm1021 = vcmp.eq.s32.totalorder %v1010, 1
      %vm1022 = vcmp.eq.s32.totalorder %v1011, 1
      %v1023 = vsel %vm1012, %v769, 0.0
      %v1024 = vsel %vm1013, %v770, 0.0
      %v1025 = vsel %vm1014, %v771, 0.0
      %v1026 = vsel %vm1015, %v772, 0.0
      %v1027 = vsel %vm1016, %v773, 0.0
      %v1028 = vsel %vm1017, %v774, 0.0
      %v1029 = vsel %vm1018, %v775, 0.0
      %v1030 = vsel %vm1019, %v776, 0.0
      %v1031 = vsel %vm1020, %v777, 0.0
      %v1032 = vsel %vm1021, %v778, 0.0
      %v1033 = vsel %vm1022, %v779, 0.0
      %vm1034 = vcmask 64512
      %v1035 = vsel %vm1034, %v1023, 0.0
      %v1036 = vsel %vm1034, %v1024, 0.0
      %v1037 = vadd.f32 %v1035, %v1036
      %v1038 = vsel %vm1034, %v1025, 0.0
      %v1039 = vadd.f32 %v1037, %v1038
      %v1040 = vsel %vm1034, %v1026, 0.0
      %v1041 = vadd.f32 %v1039, %v1040
      %v1042 = vsel %vm1034, %v1027, 0.0
      %v1043 = vadd.f32 %v1041, %v1042
      %v1044 = vsel %vm1034, %v1028, 0.0
      %v1045 = vadd.f32 %v1043, %v1044
      %v1046 = vsel %vm1034, %v1029, 0.0
      %v1047 = vadd.f32 %v1045, %v1046
      %v1048 = vsel %vm1034, %v1030, 0.0
      %v1049 = vadd.f32 %v1047, %v1048
      %v1050 = vsel %vm1034, %v1031, 0.0
      %v1051 = vadd.f32 %v1049, %v1050
      %v1052 = vsel %vm1034, %v1032, 0.0
      %v1053 = vadd.f32 %v1051, %v1052
      %vm1054 = vcmask 57344
      %v1055 = vsel %vm1054, %v1033, 0.0
      %v1056 = vadd.f32 %v1053, %v1055
      %v1057 = vrot.slane %v1056, 4
      %v1058 = vadd.f32 %v1056, %v1057
      %v1059 = vrot.slane %v1058, 2
      %v1060 = vadd.f32 %v1058, %v1059
      %v1061 = vrot.slane %v1060, 1
      %v1062 = vadd.f32 %v1060, %v1061
      %v1063 = vmul.f32 %v1023, %v1023
      %v1064 = vmul.f32 %v1024, %v1024
      %v1065 = vmul.f32 %v1025, %v1025
      %v1066 = vmul.f32 %v1026, %v1026
      %v1067 = vmul.f32 %v1027, %v1027
      %v1068 = vmul.f32 %v1028, %v1028
      %v1069 = vmul.f32 %v1029, %v1029
      %v1070 = vmul.f32 %v1030, %v1030
      %v1071 = vmul.f32 %v1031, %v1031
      %v1072 = vmul.f32 %v1032, %v1032
      %v1073 = vmul.f32 %v1033, %v1033
      %v1074 = vsel %vm1034, %v1063, 0.0
      %v1075 = vsel %vm1034, %v1064, 0.0
      %v1076 = vadd.f32 %v1074, %v1075
      %v1077 = vsel %vm1034, %v1065, 0.0
      %v1078 = vadd.f32 %v1076, %v1077
      %v1079 = vsel %vm1034, %v1066, 0.0
      %v1080 = vadd.f32 %v1078, %v1079
      %v1081 = vsel %vm1034, %v1067, 0.0
      %v1082 = vadd.f32 %v1080, %v1081
      %v1083 = vsel %vm1034, %v1068, 0.0
      %v1084 = vadd.f32 %v1082, %v1083
      %v1085 = vsel %vm1034, %v1069, 0.0
      %v1086 = vadd.f32 %v1084, %v1085
      %v1087 = vsel %vm1034, %v1070, 0.0
      %v1088 = vadd.f32 %v1086, %v1087
      %v1089 = vsel %vm1034, %v1071, 0.0
      %v1090 = vadd.f32 %v1088, %v1089
      %v1091 = vsel %vm1034, %v1072, 0.0
      %v1092 = vadd.f32 %v1090, %v1091
      %v1093 = vsel %vm1054, %v1073, 0.0
      %v1094 = vadd.f32 %v1092, %v1093
      %v1095 = vrot.slane %v1094, 4
      %v1096 = vadd.f32 %v1094, %v1095
      %v1097 = vrot.slane %v1096, 2
      %v1098 = vadd.f32 %v1096, %v1097
      %v1099 = vrot.slane %v1098, 1
      %v1100 = vadd.f32 %v1098, %v1099
      %v1101 = vmul.f32 %v1062, 0.015625
      %v1102 = vmul.f32 %v1100, 0.015625
      %v1103 = vmul.f32 %v1101, %v1101
      %v1104 = vsub.f32 %v1102, %v1103
      %v1105 = vmax.f32 %v1104, 0.0
      %v1106 = vsub.f32 %v769, %v1101
      %v1107 = vsub.f32 %v770, %v1101
      %v1108 = vsub.f32 %v771, %v1101
      %v1109 = vsub.f32 %v772, %v1101
      %v1110 = vsub.f32 %v773, %v1101
      %v1111 = vsub.f32 %v774, %v1101
      %v1112 = vsub.f32 %v775, %v1101
      %v1113 = vsub.f32 %v776, %v1101
      %v1114 = vsub.f32 %v777, %v1101
      %v1115 = vsub.f32 %v778, %v1101
      %v1116 = vsub.f32 %v779, %v1101
      %v1117 = vadd.f32 %v1105, 1e-05
      %v1118 = vrsqrt.pop %v1117
      %v1119 = vmul.f32 %v1106, %v1118
      %v1120 = vmul.f32 %v1107, %v1118
      %v1121 = vmul.f32 %v1108, %v1118
      %v1122 = vmul.f32 %v1109, %v1118
      %v1123 = vmul.f32 %v1110, %v1118
      %v1124 = vmul.f32 %v1111, %v1118
      %v1125 = vmul.f32 %v1112, %v1118
      %v1126 = vmul.f32 %v1113, %v1118
      %v1127 = vmul.f32 %v1114, %v1118
      %v1128 = vmul.f32 %v1115, %v1118
      %v1129 = vmul.f32 %v1116, %v1118
      %vm1130 = vcmp.ge.f32.partialorder %v1119, 0.0
      %vm1131 = vcmp.ge.f32.partialorder %v1120, 0.0
      %vm1132 = vcmp.ge.f32.partialorder %v1121, 0.0
      %vm1133 = vcmp.ge.f32.partialorder %v1122, 0.0
      %vm1134 = vcmp.ge.f32.partialorder %v1123, 0.0
      %vm1135 = vcmp.ge.f32.partialorder %v1124, 0.0
      %vm1136 = vcmp.ge.f32.partialorder %v1125, 0.0
      %vm1137 = vcmp.ge.f32.partialorder %v1126, 0.0
      %vm1138 = vcmp.ge.f32.partialorder %v1127, 0.0
      %vm1139 = vcmp.ge.f32.partialorder %v1128, 0.0
      %vm1140 = vcmp.ge.f32.partialorder %v1129, 0.0
      %v1141 = vmul.f32 %v1119, 0.2
      %v1142 = vmul.f32 %v1120, 0.2
      %v1143 = vmul.f32 %v1121, 0.2
      %v1144 = vmul.f32 %v1122, 0.2
      %v1145 = vmul.f32 %v1123, 0.2
      %v1146 = vmul.f32 %v1124, 0.2
      %v1147 = vmul.f32 %v1125, 0.2
      %v1148 = vmul.f32 %v1126, 0.2
      %v1149 = vmul.f32 %v1127, 0.2
      %v1150 = vmul.f32 %v1128, 0.2
      %v1151 = vmul.f32 %v1129, 0.2
      %v1152 = vsel %vm1130, %v1119, %v1141
      %v1153 = vsel %vm1131, %v1120, %v1142
      %v1154 = vsel %vm1132, %v1121, %v1143
      %v1155 = vsel %vm1133, %v1122, %v1144
      %v1156 = vsel %vm1134, %v1123, %v1145
      %v1157 = vsel %vm1135, %v1124, %v1146
      %v1158 = vsel %vm1136, %v1125, %v1147
      %v1159 = vsel %vm1137, %v1126, %v1148
      %v1160 = vsel %vm1138, %v1127, %v1149
      %v1161 = vsel %vm1139, %v1128, %v1150
      %v1162 = vsel %vm1140, %v1129, %v1151
      %1163 = vst.msk [vmem:[%s143] sm:$0xff] %vm1034, %v1152
      %1164 = vst.msk [vmem:[%s143 + $0x8] sm:$0xff] %vm1034, %v1153
      %1165 = vst.msk [vmem:[%s143 + $0x10] sm:$0xff] %vm1034, %v1154
      %1166 = vst.msk [vmem:[%s143 + $0x18] sm:$0xff] %vm1034, %v1155
      %1167 = vst.msk [vmem:[%s143 + $0x20] sm:$0xff] %vm1034, %v1156
      %1168 = vst.msk [vmem:[%s143 + $0x28] sm:$0xff] %vm1034, %v1157
      %1169 = vst.msk [vmem:[%s143 + $0x30] sm:$0xff] %vm1034, %v1158
      %1170 = vst.msk [vmem:[%s143 + $0x38] sm:$0xff] %vm1034, %v1159
      %1171 = vst.msk [vmem:[%s143 + $0x40] sm:$0xff] %vm1034, %v1160
      %1172 = vst.msk [vmem:[%s143 + $0x48] sm:$0xff] %vm1034, %v1161
      %1173 = vst.msk [vmem:[%s143 + $0x50] sm:$0x1] %vm1054, %v1162
      %p1174 = scmp.lt.s32.totalorder %s13, 1
      %s1175 = scalar_select %p1174, %s13, 1
      %s1176 = smul.addr %s1175, 11
      %s1177 = smul.addr %s1176, 8
      %s1178 = scalar_lea.vmem %s2, %s1177
      // Predicated region
      $region29: #{unet_down.1} parent=27 // pred_check
        %p1179 = pneg %p78
      $region30: #{unet_down.1} parent=27 // pred_check_branch
        %1181 = sbr.rel (%p1179) target = $region32
      $region31: #{unet_down.1} parent=27 // pred_region
        _
      $region32: #{unet_down.1} parent=27 // pred_fallthru
        _
    $region28: #{unet_down.1} parent=5 // pred_fallthru
      _
    %p1182 = scmp.le.s32.totalorder 2, %s8
    // Predicated region
    $region33: #{unet_down.1} parent=5 // pred_check
      %p1183 = pneg %p1182
    $region34: #{unet_down.1} parent=5 // pred_check_branch
      %1185 = sbr.rel (%p1183) target = $region36
    $region35: #{unet_down.1} parent=5 // pred_region
      %s1186 = ssub.s32 %s8, 2
      // Predicated region
      $region37: #{unet_down.1} parent=35 // pred_check
        %p1187 = pneg %p84
      $region38: #{unet_down.1} parent=35 // pred_check_branch
        %1189 = sbr.rel (%p1187) target = $region40
      $region39: #{unet_down.1} parent=35 // pred_region
        %p1190 = scmp.lt.s32.totalorder %s14, 1
        %s1191 = scalar_select %p1190, %s14, 1
        %s1192 = smul.addr %s1191, 11
        %s1193 = smul.addr %s1192, 8
        %s1194 = scalar_lea.vmem %s2, %s1193
      $region40: #{unet_down.1} parent=35 // pred_fallthru
        _
    $region36: #{unet_down.1} parent=5 // pred_fallthru
      _
  $region6: #{unet_down.1} parent=0 // loop_footer
    %s12 = sadd.s32 1, %s8
  $region7: #{unet_down.1} parent=0 // loop_footer_branch
    %7 = sbr.rel target = $region3
  $region8: #{unet_down.1} parent=0 // loop_exit
    _

</llo_original>
